<compile_context>
chip_gen: v6e
topology: v6e:2x2x1
jax: 0.10.0
libtpu: 0.0.40
codegen_flags: <defaults>
</compile_context>

<pallas_src>
import functools

import jax
import jax.numpy as jnp
from jax.experimental import pallas as pl
from jax.experimental.pallas import tpu as pltpu


_DEFAULT_VMEM_CAP = 64 << 20   # conservative fallback = v7x per-TC VMEM
_HEADROOM = 6 << 20            # compiler / internal-scratch headroom


def _vmem_capacity_bytes():
    """Physical VMEM per TensorCore; conservative fallback if the query fails."""
    try:
        cap = int(pltpu.get_tpu_info().vmem_capacity_bytes)
        if cap > 0:
            return cap
    except Exception:
        pass
    return _DEFAULT_VMEM_CAP


def _vmem_estimate(tm, tn, dim, weight_bufs):
    """Rough VMEM footprint for one grid step (bytes)."""
    bf16, f32 = 2, 4
    return (2 * bf16 * tm * dim                 # x tile, double-buffered
            + weight_bufs * bf16 * dim * 2 * tn  # fused w1|w3 tile(s)
            + weight_bufs * bf16 * tn * dim      # w2 row tile(s)
            + 2 * bf16 * tm * dim               # out tile, double-buffered
            + f32 * tm * dim                    # f32 accumulator scratch
            + 3 * f32 * tm * 2 * tn)            # f32 h / gated temporaries


def _select_block_tokens(dim, tn, vmem_cap):
    """Largest token tile (multiple of 128) whose working set fits VMEM."""
    for tm in (768, 640, 512, 384, 256, 128):
        if _vmem_estimate(tm, tn, dim, 2) + _HEADROOM <= vmem_cap:
            return tm
    return 128


def _weight_spec(block_shape, index_map, buffer_count):
    """BlockSpec with optional deeper pipelining (falls back if unsupported)."""
    if buffer_count is not None and hasattr(pl, "Buffered"):
        try:
            return pl.BlockSpec(block_shape, index_map,
                                pipeline_mode=pl.Buffered(buffer_count))
        except Exception:
            pass
    return pl.BlockSpec(block_shape, index_map)


def _mlp_kernel(x_ref, w13_ref, w2t_ref, o_ref, acc_ref, *, tn):
    # x_ref:   (tm, dim)     bf16 token tile (resident across j)
    # w13_ref: (dim, 2*tn)   bf16 fused [w1_j | w3_j] tile (contiguous HBM slab)
    # w2t_ref: (tn, dim)     bf16 down-projection row tile
    # o_ref:   (tm, dim)     bf16 output tile (resident across j)
    # acc_ref: (tm, dim)     f32 accumulator scratch
    j = pl.program_id(1)

    @pl.when(j == 0)
    def _():
        acc_ref[...] = jnp.zeros_like(acc_ref)

    # Single MXU pass of x against the fused [w1 | w3] tile (f32 accumulation).
    h = jnp.dot(x_ref[...], w13_ref[...], preferred_element_type=jnp.float32)
    h1 = h[:, :tn]
    h3 = h[:, tn:]

    # SiLU(h1) * h3 on a (tm, tn) f32 block; sigmoid goes to the EUP slot.
    gated = (h1 * jax.nn.sigmoid(h1)) * h3

    # Partial down-projection for this inter_dim tile, accumulated in f32.
    # NOTE: gated is deliberately cast to bf16 for the MXU (standard practice;
    # f32 accumulation keeps the result within tolerance of the f32 reference).
    acc_ref[...] += jnp.dot(gated.astype(w2t_ref.dtype), w2t_ref[...],
                            preferred_element_type=jnp.float32)

    @pl.when(j == pl.num_programs(1) - 1)
    def _():
        o_ref[...] = acc_ref[...].astype(o_ref.dtype)


def prepare_mlp_weights(w1, w2, w3, *, block_inter=None):
    """One-time weight prep (call at parameter-load time, NOT per forward).

    w1, w3: [inter_dim, dim]   (PyTorch Linear layout)
    w2:     [dim, inter_dim]

    Returns (w13, w2t, tn):
      w13: [n_blocks, dim, 2*tn] — per-block fused [w1_j | w3_j], each block a
           fully contiguous HBM slab (one big DMA per grid-j step)
      w2t: [inter_pad, dim]      — transposed (zero-padded) down projection
      tn:  inter_dim tile width actually used
    """
    inter_dim, dim = w1.shape
    if block_inter is None:
        # v7x (64 MiB VMEM/TC) prefers tn=128 so a larger token tile fits;
        # 128 MiB chips (v5e/v6e) take tn=256.
        block_inter = 128 if _vmem_capacity_bytes() <= (64 << 20) else 256
    tn = min(block_inter, inter_dim)
    n_blocks = -(-inter_dim // tn)
    inter_pad = n_blocks * tn

    w1t = jnp.transpose(w1)   # (dim, inter_dim)
    w3t = jnp.transpose(w3)   # (dim, inter_dim)
    w2t = jnp.transpose(w2)   # (inter_dim, dim)

    if inter_pad != inter_dim:
        pad = inter_pad - inter_dim
        # Zero padding keeps padded inter_dim columns numerically inert:
        # h1 = h3 = 0 there, and the padded w2 rows contribute nothing.
        w1t = jnp.pad(w1t, ((0, 0), (0, pad)))
        w3t = jnp.pad(w3t, ((0, 0), (0, pad)))
        w2t = jnp.pad(w2t, ((0, pad), (0, 0)))

    # Per-block fused layout (n_blocks, dim, 2*tn): within a block the first tn
    # columns are the w1 tile, the next tn the w3 tile.
    w13 = jnp.stack(
        [w1t.reshape(dim, n_blocks, tn), w3t.reshape(dim, n_blocks, tn)],
        axis=2,
    )                                                      # (dim, nb, 2, tn)
    w13 = jnp.transpose(w13, (1, 0, 2, 3)).reshape(n_blocks, dim, 2 * tn)
    return w13, w2t, tn


# TODO(synk): v7x decode — split the j (inter) reduction across the 2 TCs
#             (leading grid axis of size 2 + cheap partial-sum add outside).
# TODO(synk): fp8 (v7x) / int8 (v5e/v6e) weight streaming with per-tile scales
#             to halve weight HBM bytes in the weight-bound regime.
# TODO(synk): evaluate pl.Buffered(1) on the j-resident x tile to free one
#             buffer for a larger tm (verify with a bundle/xprof diff).
@functools.partial(jax.jit, static_argnames=("tn", "block_tokens"))
def mlp_forward(x, w13, w2t, *, tn, block_tokens=None):
    """x: [..., dim]; w13/w2t from prepare_mlp_weights."""
    orig_shape = x.shape
    dim = orig_shape[-1]
    tokens = 1
    for s in orig_shape[:-1]:
        tokens *= s
    x2d = x.reshape(tokens, dim)

    inter_pad = w2t.shape[0]
    n_j = inter_pad // tn

    vmem_cap = _vmem_capacity_bytes()
    if block_tokens is None:
        block_tokens = _select_block_tokens(dim, tn, vmem_cap)
    tm = min(block_tokens, tokens)
    n_i = pl.cdiv(tokens, tm)
    grid = (n_i, n_j)

    # Decode-like shapes (single token tile, many weight tiles): weight DMA
    # dominates, so deepen weight buffering to keep DMA engines back-to-back.
    decode = (n_i == 1) and (n_j >= 2)
    weight_bufs = None
    if decode and _vmem_estimate(tm, tn, dim, 3) + _HEADROOM <= vmem_cap:
        weight_bufs = 3

    est = _vmem_estimate(tm, tn, dim, 3 if weight_bufs else 2)
    # Clamp the scoped VMEM request against physical capacity (minus margin).
    vmem_limit = int(min(max(est + _HEADROOM, 32 << 20), vmem_cap - (2 << 20)))

    cost = pl.CostEstimate(
        flops=6 * tokens * dim * inter_pad,
        transcendentals=tokens * inter_pad,
        # Weights are re-streamed once per token tile; x read + y write once.
        bytes_accessed=n_i * 3 * dim * inter_pad * 2 + 2 * tokens * dim * 2,
    )

    out2d = pl.pallas_call(
        functools.partial(_mlp_kernel, tn=tn),
        out_shape=jax.ShapeDtypeStruct((tokens, dim), x.dtype),
        grid_spec=pltpu.PrefetchScalarGridSpec(
            num_scalar_prefetch=0,
            grid=grid,
            in_specs=[
                pl.BlockSpec((tm, dim), lambda i, j: (i, 0)),              # x
                _weight_spec((None, dim, 2 * tn), lambda i, j: (j, 0, 0),  # w1|w3
                             weight_bufs),
                _weight_spec((tn, dim), lambda i, j: (j, 0),               # w2 rows
                             weight_bufs),
            ],
            out_specs=pl.BlockSpec((tm, dim), lambda i, j: (i, 0)),
            scratch_shapes=[pltpu.VMEM((tm, dim), jnp.float32)],
        ),
        compiler_params=pltpu.CompilerParams(
            dimension_semantics=("parallel", "arbitrary"),
            vmem_limit_bytes=vmem_limit,
        ),
        cost_estimate=cost,
    )(x2d, w13, w2t)

    return out2d.reshape(orig_shape)


def init_mlp_params(key, dim, inter_dim, dtype=jnp.bfloat16):
    """Matches Linear.__init__: randn(out, in) * in**-0.5, bf16, no bias."""
    k1, k2, k3 = jax.random.split(key, 3)
    w1 = (jax.random.normal(k1, (inter_dim, dim), jnp.float32)
          * dim ** (-0.5)).astype(dtype)
    w2 = (jax.random.normal(k2, (dim, inter_dim), jnp.float32)
          * inter_dim ** (-0.5)).astype(dtype)
    w3 = (jax.random.normal(k3, (inter_dim, dim), jnp.float32)
          * dim ** (-0.5)).astype(dtype)
    return w1, w2, w3


if __name__ == "__main__":
    batch, seq, dim, inter_dim = 2, 8, 32, 64

    key = jax.random.PRNGKey(0)
    kx, kp = jax.random.split(key)
    x = jax.random.normal(kx, (batch, seq, dim), jnp.float32).astype(jnp.bfloat16)
    w1, w2, w3 = init_mlp_params(kp, dim, inter_dim)

    # One-time weight prep (transpose + fuse + pad + contiguous per-j layout).
    w13, w2t, tn = prepare_mlp_weights(w1, w2, w3)
    y = mlp_forward(x, w13, w2t, tn=tn)
    y = jax.block_until_ready(y)

    # Pure-JAX reference for sanity.
    def ref(x, w1, w2, w3):
        xf = x.astype(jnp.float32)
        h1 = xf @ w1.astype(jnp.float32).T
        h3 = xf @ w3.astype(jnp.float32).T
        g = h1 * jax.nn.sigmoid(h1) * h3
        return (g @ w2.astype(jnp.float32).T).astype(x.dtype)

    y_ref = ref(x, w1, w2, w3)
    assert y.shape == (batch, seq, dim) and y.dtype == jnp.bfloat16
    err = jnp.max(jnp.abs(y.astype(jnp.float32) - y_ref.astype(jnp.float32)))
    assert float(err) < 1e-1, f"max abs err {err}"

    print("KERNEL_OK")
</pallas_src>

<mosaic_0001>
module attributes {stable_mosaic.version = 11 : i64} {
  func.func @_mlp_kernel(%arg0: i32, %arg1: i32, %arg2: memref<16x32xbf16, #tpu.memory_space<vmem>>, %arg3: memref<1x32x128xbf16, #tpu.memory_space<vmem>>, %arg4: memref<64x32xbf16, #tpu.memory_space<vmem>>, %arg5: memref<16x32xbf16, #tpu.memory_space<vmem>>, %arg6: memref<16x32xf32, #tpu.memory_space<vmem>>) attributes {dimension_semantics = [#tpu.dimension_semantics<parallel>, #tpu.dimension_semantics<arbitrary>], iteration_bounds = array<i64: 1, 1>, scalar_prefetch = 0 : i64, scratch_operands = 1 : i64, tpu.core_type = #tpu.core_type<tc>, window_params = [{transform_indices = @transform_0, window_bounds = array<i64: 16, 32>}, {transform_indices = @transform_1, window_bounds = array<i64: 1, 32, 128>}, {transform_indices = @transform_2, window_bounds = array<i64: 64, 32>}, {transform_indices = @transform_3, window_bounds = array<i64: 16, 32>}]} {
    %c0_i32 = arith.constant 0 : i32
    %0 = arith.cmpi eq, %arg1, %c0_i32 : i32
    %1 = arith.extui %0 : i1 to i32
    %c0_i32_0 = arith.constant 0 : i32
    %2 = arith.cmpi ne, %1, %c0_i32_0 : i32
    scf.if %2 {
      %cst_15 = arith.constant 0.000000e+00 : f32
      %25 = vector.broadcast %cst_15 : f32 to vector<16x32xf32>
      %c0_16 = arith.constant 0 : index
      %c0_17 = arith.constant 0 : index
      %26 = vector.load %arg6[%c0_16, %c0_17] : memref<16x32xf32, #tpu.memory_space<vmem>>, vector<16x32xf32>
      tpu.vector_store %arg6[%c0_16, %c0_17], %25 {strides = array<i32>} : memref<16x32xf32, #tpu.memory_space<vmem>>, vector<16x32xf32>,
    } else {
    }
    %c0 = arith.constant 0 : index
    %c0_1 = arith.constant 0 : index
    %3 = vector.load %arg2[%c0, %c0_1] : memref<16x32xbf16, #tpu.memory_space<vmem>>, vector<16x32xbf16>
    %c0_2 = arith.constant 0 : index
    %c0_3 = arith.constant 0 : index
    %c0_4 = arith.constant 0 : index
    %4 = vector.load %arg3[%c0_2, %c0_3, %c0_4] : memref<1x32x128xbf16, #tpu.memory_space<vmem>>, vector<1x32x128xbf16>
    %5 = vector.shape_cast %4 : vector<1x32x128xbf16> to vector<32x128xbf16>
    %cst = arith.constant dense<0.000000e+00> : vector<16x128xf32>
    %6 = tpu.matmul %3, %5, %cst {dimension_numbers = #tpu.dot_dimension_numbers<[1], [0], [0], [1], [0, 0, 1, 1], [], []>} : vector<16x32xbf16>, vector<32x128xbf16>, vector<16x128xf32> -> vector<16x128xf32>
    %7 = vector.extract_strided_slice %6 {offsets = [0, 0], sizes = [16, 64], strides = [1, 1]} : vector<16x128xf32> to vector<16x64xf32>
    %8 = vector.extract_strided_slice %6 {offsets = [0, 64], sizes = [16, 64], strides = [1, 1]} : vector<16x128xf32> to vector<16x64xf32>
    %9 = arith.negf %7 : vector<16x64xf32>
    %10 = math.exp %9 : vector<16x64xf32>
    %cst_5 = arith.constant 1.000000e+00 : f32
    %11 = vector.broadcast %cst_5 : f32 to vector<16x64xf32>
    %12 = arith.addf %11, %10 : vector<16x64xf32>
    %13 = arith.divf %11, %12 : vector<16x64xf32>
    %14 = arith.mulf %7, %13 : vector<16x64xf32>
    %15 = arith.mulf %14, %8 : vector<16x64xf32>
    %c0_6 = arith.constant 0 : index
    %c0_7 = arith.constant 0 : index
    %16 = vector.load %arg6[%c0_6, %c0_7] : memref<16x32xf32, #tpu.memory_space<vmem>>, vector<16x32xf32>
    %17 = arith.truncf %15 : vector<16x64xf32> to vector<16x64xbf16>
    %c0_8 = arith.constant 0 : index
    %c0_9 = arith.constant 0 : index
    %18 = vector.load %arg4[%c0_8, %c0_9] : memref<64x32xbf16, #tpu.memory_space<vmem>>, vector<64x32xbf16>
    %cst_10 = arith.constant dense<0.000000e+00> : vector<16x32xf32>
    %19 = tpu.matmul %17, %18, %cst_10 {dimension_numbers = #tpu.dot_dimension_numbers<[1], [0], [0], [1], [0, 0, 1, 1], [], []>} : vector<16x64xbf16>, vector<64x32xbf16>, vector<16x32xf32> -> vector<16x32xf32>
    %20 = arith.addf %16, %19 : vector<16x32xf32>
    %c0_11 = arith.constant 0 : index
    %c0_12 = arith.constant 0 : index
    %21 = vector.load %arg6[%c0_11, %c0_12] : memref<16x32xf32, #tpu.memory_space<vmem>>, vector<16x32xf32>
    tpu.vector_store %arg6[%c0_11, %c0_12], %20 {strides = array<i32>} : memref<16x32xf32, #tpu.memory_space<vmem>>, vector<16x32xf32>,
    %c0_i32_13 = arith.constant 0 : i32
    %22 = arith.cmpi eq, %arg1, %c0_i32_13 : i32
    %23 = arith.extui %22 : i1 to i32
    %c0_i32_14 = arith.constant 0 : i32
    %24 = arith.cmpi ne, %23, %c0_i32_14 : i32
    scf.if %24 {
      %c0_15 = arith.constant 0 : index
      %c0_16 = arith.constant 0 : index
      %25 = vector.load %arg6[%c0_15, %c0_16] : memref<16x32xf32, #tpu.memory_space<vmem>>, vector<16x32xf32>
      %26 = arith.truncf %25 : vector<16x32xf32> to vector<16x32xbf16>
      %c0_17 = arith.constant 0 : index
      %c0_18 = arith.constant 0 : index
      %27 = vector.load %arg5[%c0_17, %c0_18] : memref<16x32xbf16, #tpu.memory_space<vmem>>, vector<16x32xbf16>
      tpu.vector_store %arg5[%c0_17, %c0_18], %26 {strides = array<i32>} : memref<16x32xbf16, #tpu.memory_space<vmem>>, vector<16x32xbf16>,
    } else {
    }
    return
  }
  func.func @transform_0(%arg0: i32, %arg1: i32) -> (i32, i32) {
    %c0_i32 = arith.constant 0 : i32
    %c0_i32_0 = arith.constant 0 : i32
    return %arg0, %c0_i32 : i32, i32
  }
  func.func @transform_1(%arg0: i32, %arg1: i32) -> (i32, i32, i32) {
    %c0_i32 = arith.constant 0 : i32
    %c0_i32_0 = arith.constant 0 : i32
    %c0_i32_1 = arith.constant 0 : i32
    return %arg1, %c0_i32, %c0_i32_0 : i32, i32, i32
  }
  func.func @transform_2(%arg0: i32, %arg1: i32) -> (i32, i32) {
    %c0_i32 = arith.constant 0 : i32
    %c0_i32_0 = arith.constant 0 : i32
    return %arg1, %c0_i32 : i32, i32
  }
  func.func @transform_3(%arg0: i32, %arg1: i32) -> (i32, i32) {
    %c0_i32 = arith.constant 0 : i32
    %c0_i32_0 = arith.constant 0 : i32
    return %arg0, %c0_i32 : i32, i32
  }
}

</mosaic_0001>

<llo_original>
// kernel: mlp_forward.1
$region0: #{mlp_forward.1}
  #allocation0 [shape = 'u32[]', space=smem, size = 0x4, offset = 0x4, fixed_abs, tag = 'smem constant byte address 0x4 - core index']
  #allocation1 [shape = 'u32[144,128]{1,0:T(1,128)}', space=vmem, size = 0x12000, scoped, tag = 'internal scratch']
  #allocation2 [shape = 'f32[16,32]{1,0:T(8,128)}', space=vmem, size = 0x2000, scoped, tag = 'scratch operand']
  %s0 = inlined_call_operand.vmem [shape: bf16[16,32], index: 0, kind: input, shape index: {}]
  %s1 = inlined_call_operand.vmem [shape: bf16[1,32,128], index: 1, kind: input, shape index: {}]
  %s2 = inlined_call_operand.vmem [shape: bf16[64,32], index: 2, kind: input, shape index: {}]
  %s3 = inlined_call_operand.hbm [shape: bf16[16,32], index: 3, kind: output, shape index: {}]
  %s4 = sld [smem:[#allocation0]]
  $region30: #{mlp_forward.1} parent=0
    _
  %s6 = ssub.s32 1, %s4
  %s7 = scalar_select 0, %s6, %s4
  $region1: #{mlp_forward.1} parent=0
    #allocation3 [shape = 'u8[4096]{0}', space=vmem, size = 0x1000, scoped, tag = 'output window, operand 0, single buffered']
    #allocation4 [shape = 's32[1]{0}', space=sflag, size = 0x4, scoped, tag = 'scoped memory for mlp_forward.1']
    %8 = vsyncpa [#allocation4], 0
    // Predicated region
    $region2: #{mlp_forward.1} parent=1 // pred_check
      _
    $region3: #{mlp_forward.1} parent=1 // pred_check_branch
      %10 = sbr.rel (0) target = $region5
    $region4: #{mlp_forward.1} parent=1 // pred_region
      _
    $region5: #{mlp_forward.1} parent=1 // pred_fallthru
      _
    // Predicated region
    $region6: #{mlp_forward.1} parent=1 // pred_check
      _
    $region7: #{mlp_forward.1} parent=1 // pred_check_branch
      %12 = sbr.rel (0) target = $region9
    $region8: #{mlp_forward.1} parent=1 // pred_region
      _
    $region9: #{mlp_forward.1} parent=1 // pred_fallthru
      _
    // Predicated region
    $region10: #{mlp_forward.1} parent=1 // pred_check
      _
    $region11: #{mlp_forward.1} parent=1 // pred_check_branch
      %14 = sbr.rel (0) target = $region13
    $region12: #{mlp_forward.1} parent=1 // pred_region
      _
    $region13: #{mlp_forward.1} parent=1 // pred_fallthru
      _
    %p16 = scmp.eq.s32.totalorder 0, 0
    // Predicated region
    $region14: #{mlp_forward.1} parent=1 // pred_check
      %p17 = pneg %p16
    $region15: #{mlp_forward.1} parent=1 // pred_check_branch
      %19 = sbr.rel (%p17) target = $region17
    $region16: #{mlp_forward.1} parent=1 // pred_region
      %vm20 = vcmask 261120
      %21 = vst.msk [vmem:[#allocation2] sm:$0xff] %vm20, 0.0
      %22 = vst.msk [vmem:[#allocation2 + $0x8] sm:$0xff] %vm20, 0.0
    $region17: #{mlp_forward.1} parent=1 // pred_fallthru
      _
    %v23 = vld [vmem:[%s0] sm:$0xf]
    %v24 = vld [vmem:[%s0 + $0x4] sm:$0xf]
    %v25 = vld [vmem:[%s1] sm:$0xf]
    %v26 = vld [vmem:[%s1 + $0x4] sm:$0xf]
    %v27 = vld [vmem:[%s1 + $0x8] sm:$0xf]
    %v28 = vld [vmem:[%s1 + $0xc] sm:$0xf]
    %v31 = vunpack.c.l.b16 %v23
    %v32 = vunpack.c.l.b16 %v24
    %v33 = vpack.c.b16 %v32, %v31
    %v38 = vunpack.c.l.b16 %v25
    %v39 = vunpack.c.l.b16 %v26
    %v40 = vunpack.c.l.b16 %v27
    %v41 = vunpack.c.l.b16 %v28
    %v42 = vpack.c.b16 %v39, %v38
    %v43 = vpack.c.b16 %v41, %v40
    %vm46 = vcmask 261120
    %v48 = vsel %vm46, %v33, 0
    %50 = vmatprep.subr.bf16.mxu0 0
    %51 = vmatpush1.bf16.msra.mxu0 0
    %52 = vmatprep.subr.bf16.mxu0 0
    %53 = vmatpush1.bf16.msra.mxu0 0
    %54 = vmatprep.subr.bf16.mxu0 0
    %55 = vmatpush1.bf16.msra.mxu0 0
    %56 = vmatprep.subr.bf16.mxu0 0
    %57 = vmatpush1.bf16.msra.mxu0 0
    %58 = vmatprep.subr.bf16.mxu0 0
    %59 = vmatpush1.bf16.msra.mxu0 0
    %60 = vmatprep.subr.bf16.mxu0 0
    %61 = vmatpush1.bf16.msra.mxu0 0
    %62 = vmatprep.subr.bf16.mxu0 0
    %63 = vmatpush1.bf16.msra.mxu0 %v43
    %64 = vmatprep.subr.bf16.mxu0 0
    %65 = vmatpush1.bf16.msra.mxu0 %v42
    %66 = vmatprep.subr.bf16.mxu0 0
    %67 = vmatpush2.bf16.msra.mxu0 0
    %68 = vmatprep.subr.bf16.mxu0 0
    %69 = vmatpush2.bf16.msra.mxu0 0
    %70 = vmatprep.subr.bf16.mxu0 0
    %71 = vmatpush2.bf16.msra.mxu0 0
    %72 = vmatprep.subr.bf16.mxu0 0
    %73 = vmatpush2.bf16.msra.mxu0 0
    %74 = vmatprep.subr.bf16.mxu0 0
    %75 = vmatpush2.bf16.msra.mxu0 0
    %76 = vmatprep.subr.bf16.mxu0 0
    %77 = vmatpush2.bf16.msra.mxu0 0
    %78 = vmatprep.subr.bf16.mxu0 0
    %79 = vmatpush2.bf16.msra.mxu0 0
    %80 = vmatprep.subr.bf16.mxu0 0
    %81 = vmatpush2.bf16.msra.mxu0 0
    %82 = vmatprep.mubr.bf16.mxu0 0
    %83 = vmatmul.mubr.bf16.gmra.mxu0 %v48
    %v84 = vpop.f32.mrf.mxu0
    %v85 = vadd.f32 0.0, %v84
    %v86 = vpop.f32.mrf.mxu0
    %v87 = vpop.f32.mrf.mxu0
    %v88 = vadd.f32 0.0, %v87
    %v89 = vpop.f32.mrf.mxu0
    %90 = vdwg.mxu0
    %v91 = vxor.u32 %v85, 2147483648
    %v92 = vxor.u32 %v88, 2147483648
    %v93 = vmul.f32 %v91, 1.442695
    %v94 = vpow.pop %v93
    %v95 = vmul.f32 %v92, 1.442695
    %v96 = vpow.pop %v95
    %v97 = vadd.f32 %v94, 1.0
    %v98 = vadd.f32 %v96, 1.0
    %v99 = vrcp.pop %v97
    %v100 = vmul.f32 1.0, %v99
    %v101 = vrcp.pop %v98
    %v102 = vmul.f32 1.0, %v101
    %v103 = vmul.f32 %v85, %v100
    %v104 = vmul.f32 %v88, %v102
    %107 = vrot.lane.b32.xlu0 %v85, 64
    %v108 = vpop.permute.xlu0 %107
    %109 = vrot.lane.b32.xlu0 %v88, 64
    %v110 = vpop.permute.xlu0 %109
    %v113 = vmul.f32 %v103, %v108
    %v114 = vmul.f32 %v104, %v110
    %v115 = vld [vmem:[#allocation2] sm:$0xff]
    %v116 = vld [vmem:[#allocation2 + $0x8] sm:$0xff]
    %v117 = vpack.c.bf16 %v114, %v113
    %v118 = vld [vmem:[%s2] sm:$0xf]
    %v119 = vld [vmem:[%s2 + $0x4] sm:$0xf]
    %v120 = vld [vmem:[%s2 + $0x8] sm:$0xf]
    %v121 = vld [vmem:[%s2 + $0xc] sm:$0xf]
    %v122 = vld [vmem:[%s2 + $0x10] sm:$0xf]
    %v123 = vld [vmem:[%s2 + $0x14] sm:$0xf]
    %v124 = vld [vmem:[%s2 + $0x18] sm:$0xf]
    %v125 = vld [vmem:[%s2 + $0x1c] sm:$0xf]
    %v134 = vunpack.c.l.b16 %v118
    %v135 = vunpack.c.l.b16 %v119
    %v136 = vunpack.c.l.b16 %v120
    %v137 = vunpack.c.l.b16 %v121
    %v138 = vunpack.c.l.b16 %v122
    %v139 = vunpack.c.l.b16 %v123
    %v140 = vunpack.c.l.b16 %v124
    %v141 = vunpack.c.l.b16 %v125
    %v142 = vpack.c.b16 %v135, %v134
    %v143 = vpack.c.b16 %v137, %v136
    %v144 = vpack.c.b16 %v139, %v138
    %v145 = vpack.c.b16 %v141, %v140
    %vm150 = vcmask 523264
    %v152 = vsel %vm150, %v117, 0
    %154 = vmatprep.subr.bf16.mxu0 0
    %155 = vmatpush1.bf16.msra.mxu0 0
    %156 = vmatprep.subr.bf16.mxu0 0
    %157 = vmatpush1.bf16.msra.mxu0 0
    %158 = vmatprep.subr.bf16.mxu0 0
    %159 = vmatpush1.bf16.msra.mxu0 0
    %160 = vmatprep.subr.bf16.mxu0 0
    %161 = vmatpush1.bf16.msra.mxu0 0
    %162 = vmatprep.subr.bf16.mxu0 0
    %163 = vmatpush1.bf16.msra.mxu0 %v145
    %164 = vmatprep.subr.bf16.mxu0 0
    %165 = vmatpush1.bf16.msra.mxu0 %v144
    %166 = vmatprep.subr.bf16.mxu0 0
    %167 = vmatpush1.bf16.msra.mxu0 %v143
    %168 = vmatprep.subr.bf16.mxu0 0
    %169 = vmatpush1.bf16.msra.mxu0 %v142
    %170 = vmatprep.subr.bf16.mxu0 0
    %171 = vmatpush2.bf16.msra.mxu0 0
    %172 = vmatprep.subr.bf16.mxu0 0
    %173 = vmatpush2.bf16.msra.mxu0 0
    %174 = vmatprep.subr.bf16.mxu0 0
    %175 = vmatpush2.bf16.msra.mxu0 0
    %176 = vmatprep.subr.bf16.mxu0 0
    %177 = vmatpush2.bf16.msra.mxu0 0
    %178 = vmatprep.subr.bf16.mxu0 0
    %179 = vmatpush2.bf16.msra.mxu0 0
    %180 = vmatprep.subr.bf16.mxu0 0
    %181 = vmatpush2.bf16.msra.mxu0 0
    %182 = vmatprep.subr.bf16.mxu0 0
    %183 = vmatpush2.bf16.msra.mxu0 0
    %184 = vmatprep.subr.bf16.mxu0 0
    %185 = vmatpush2.bf16.msra.mxu0 0
    %186 = vmatprep.mubr.bf16.mxu0 0
    %187 = vmatmul.mubr.bf16.gmra.mxu0 %v152
    %v188 = vpop.f32.mrf.mxu0
    %v189 = vadd.f32 0.0, %v188
    %v190 = vpop.f32.mrf.mxu0
    %v191 = vpop.f32.mrf.mxu0
    %v192 = vadd.f32 0.0, %v191
    %v193 = vpop.f32.mrf.mxu0
    %194 = vdwg.mxu0
    %v195 = vadd.f32 %v115, %v189
    %v196 = vadd.f32 %v116, %v192
    %197 = vst.msk [vmem:[#allocation2] sm:$0xff] %vm46, %v195
    %198 = vst.msk [vmem:[#allocation2 + $0x8] sm:$0xff] %vm46, %v196
    // Predicated region
    $region18: #{mlp_forward.1} parent=1 // pred_check
      %p199 = pneg %p16
    $region19: #{mlp_forward.1} parent=1 // pred_check_branch
      %201 = sbr.rel (%p199) target = $region21
    $region20: #{mlp_forward.1} parent=1 // pred_region
      %v202 = vld [vmem:[#allocation2] sm:$0xff]
      %v203 = vld [vmem:[#allocation2 + $0x8] sm:$0xff]
      %v204 = vpack.c.bf16 %v203, %v202
      %v206 = vunpack.c.l.b16 %v204
      %v207 = vunpack.c.h.b16 %v204
      %v208 = vpack.c.b16 %v206, %v206
      %v209 = vpack.c.b16 %v207, %v207
      %vm212 = vcmask 257024
      %213 = vst.msk [vmem:[#allocation3] sm:$0xf] %vm212, %v208
      %214 = vst.msk [vmem:[#allocation3 + $0x4] sm:$0xf] %vm212, %v209
    $region21: #{mlp_forward.1} parent=1 // pred_fallthru
      _
    // Predicated region
    $region22: #{mlp_forward.1} parent=1 // pred_check
      _
    $region23: #{mlp_forward.1} parent=1 // pred_check_branch
      %216 = sbr.rel (0) target = $region25
    $region24: #{mlp_forward.1} parent=1 // pred_region
      %s218 = ssub.s32 128, 128
      %219 = vsyncadd [#allocation4], %s218
      %s220 = sshll.u32 [#allocation3], 4
      %s221 = int_to_ptr.vmem [resolvable:$true] %s220
      %226 = dma.vmem_to_hbm [thread:$0]  %s221, 128, %s3, [#allocation4], 64, 64, 4
    $region25: #{mlp_forward.1} parent=1 // pred_fallthru
      _
    // Predicated region
    $region26: #{mlp_forward.1} parent=1 // pred_check
      _
    $region27: #{mlp_forward.1} parent=1 // pred_check_branch
      %228 = sbr.rel (0) target = $region29
    $region28: #{mlp_forward.1} parent=1 // pred_region
      %229 = dma.done [#allocation4], 128
    $region29: #{mlp_forward.1} parent=1 // pred_fallthru
      _
    %230 = vsyncpa [#allocation4], 1

</llo_original>
